<compile_context>
chip_gen: v7x
topology: tpu7x:2x2x1
jax: 0.10.0
libtpu: 0.0.40
codegen_flags: <defaults>
</compile_context>

<pallas_src>
import jax
import jax.numpy as jnp
from jax.experimental import pallas as pl
from jax.experimental.pallas import tpu as pltpu


def _convt_sig_add_kernel(x_ref, w_ref, b_ref, o_ref):
    # x_ref: (R, 128) f32 in VMEM   -- cropped + zero-padded input, lane-dense
    # w_ref: (C_out,) f32 in SMEM   -- per-output-channel weight (scalar splat)
    # b_ref: (C_out,) f32 in SMEM   -- per-output-channel bias
    # o_ref: (C_out, R, 128) f32 in VMEM
    x = x_ref[...]                                   # ~4 vregs, reused per channel
    c_out = o_ref.shape[0]
    for c in range(c_out):                           # fully unrolled, static SMEM idx
        v1 = x * w_ref[c] + b_ref[c]                 # VPU scale + bias
        sig = 0.5 * jnp.tanh(0.5 * v1) + 0.5         # sigmoid via one EUP tanh
        o_ref[c, :, :] = v1 + sig                    # unmasked lane-dense store


def model_forward(x_nchw, weight, bias, padding=1):
    """x_nchw: (1, 1, H, W); weight: (1, C_out, 1, 1); bias: (C_out,)."""
    N, C_in, H, W = x_nchw.shape
    assert N == 1 and C_in == 1
    C_out = weight.shape[1]
    H_out, W_out = H - 2 * padding, W - 2 * padding

    LANES = 128
    total = H_out * W_out                            # 62*62 = 3844
    R = -(-total // LANES)                           # 31
    R = ((R + 7) // 8) * 8                           # sublane-align -> 32
    padded = R * LANES                               # 4096

    # Crop on the small input side, then pad to a lane-dense aligned slab.
    x_crop = x_nchw[0, 0, padding:padding + H_out, padding:padding + W_out]
    x_flat = x_crop.reshape(-1).astype(jnp.float32)
    x2d = jnp.pad(x_flat, (0, padded - total)).reshape(R, LANES)

    w = weight[0, :, 0, 0].astype(jnp.float32)       # (C_out,)
    b = bias.astype(jnp.float32)                     # (C_out,)

    out = pl.pallas_call(
        _convt_sig_add_kernel,
        out_shape=jax.ShapeDtypeStruct((C_out, R, LANES), jnp.float32),
        in_specs=[
            pl.BlockSpec(memory_space=pltpu.MemorySpace.VMEM),
            pl.BlockSpec(memory_space=pltpu.MemorySpace.SMEM),
            pl.BlockSpec(memory_space=pltpu.MemorySpace.SMEM),
        ],
        out_specs=pl.BlockSpec(memory_space=pltpu.MemorySpace.VMEM),
    )(x2d, w, b)

    # Contiguous per-channel slice (valid prefix), no strided 62x62 crop.
    out_img = out.reshape(C_out, padded)[:, :total].reshape(C_out, H_out, W_out)
    return out_img[None]                             # (1, C_out, H-2p, W-2p), NCHW


model_forward_jit = jax.jit(model_forward)


def reference_forward(x_nchw, weight, bias, padding=1):
    """Pure-JAX reference for sanity checking."""
    H_out = x_nchw.shape[2] - 2 * padding
    W_out = x_nchw.shape[3] - 2 * padding
    x_crop = x_nchw[0, 0, padding:padding + H_out, padding:padding + W_out]
    w = weight[0, :, 0, 0][:, None, None]
    b = bias[:, None, None]
    v1 = x_crop[None] * w + b
    return (v1 + jax.nn.sigmoid(v1))[None]


if __name__ == "__main__":
    key = jax.random.PRNGKey(0)
    k_x, k_w, k_b = jax.random.split(key, 3)

    # Input matching the module's driver: torch.randn(1, 1, 64, 64)
    x1 = jax.random.normal(k_x, (1, 1, 64, 64), dtype=jnp.float32)

    # ConvTranspose2d(1, 8, 1): weight (in=1, out=8, 1, 1), bias (8,).
    # PyTorch init bound: sqrt(1 / (out_channels * kh * kw)) = sqrt(1/8).
    bound = (1.0 / 8.0) ** 0.5
    weight = jax.random.uniform(k_w, (1, 8, 1, 1), jnp.float32, -bound, bound)
    bias = jax.random.uniform(k_b, (8,), jnp.float32, -bound, bound)

    out = model_forward_jit(x1, weight, bias)
    jax.block_until_ready(out)

    ref = reference_forward(x1, weight, bias)
    assert out.shape == (1, 8, 62, 62), out.shape
    assert jnp.allclose(out, ref, atol=1e-5, rtol=1e-5)

    print("KERNEL_OK")
</pallas_src>

<mosaic_0001>
module attributes {stable_mosaic.version = 11 : i64} {
  func.func @_convt_sig_add_kernel(%arg0: memref<32x128xf32, #tpu.memory_space<vmem>>, %arg1: memref<8xf32, #tpu.memory_space<smem>>, %arg2: memref<8xf32, #tpu.memory_space<smem>>, %arg3: memref<8x32x128xf32, #tpu.memory_space<vmem>>) attributes {dimension_semantics = [], scalar_prefetch = 0 : i64, scratch_operands = 0 : i64, tpu.core_type = #tpu.core_type<tc>} {
    %c0 = arith.constant 0 : index
    %c0_0 = arith.constant 0 : index
    %0 = vector.load %arg0[%c0, %c0_0] : memref<32x128xf32, #tpu.memory_space<vmem>>, vector<32x128xf32>
    %c0_1 = arith.constant 0 : index
    %1 = memref.load %arg1[%c0_1] : memref<8xf32, #tpu.memory_space<smem>>
    %2 = vector.broadcast %1 : f32 to vector<32x128xf32>
    %3 = arith.mulf %0, %2 : vector<32x128xf32>
    %c0_2 = arith.constant 0 : index
    %4 = memref.load %arg2[%c0_2] : memref<8xf32, #tpu.memory_space<smem>>
    %5 = vector.broadcast %4 : f32 to vector<32x128xf32>
    %6 = arith.addf %3, %5 : vector<32x128xf32>
    %cst = arith.constant 5.000000e-01 : f32
    %7 = vector.broadcast %cst : f32 to vector<32x128xf32>
    %8 = arith.mulf %7, %6 : vector<32x128xf32>
    %9 = math.tanh %8 : vector<32x128xf32>
    %cst_3 = arith.constant 5.000000e-01 : f32
    %10 = vector.broadcast %cst_3 : f32 to vector<32x128xf32>
    %11 = arith.mulf %10, %9 : vector<32x128xf32>
    %cst_4 = arith.constant 5.000000e-01 : f32
    %12 = vector.broadcast %cst_4 : f32 to vector<32x128xf32>
    %13 = arith.addf %11, %12 : vector<32x128xf32>
    %14 = arith.addf %6, %13 : vector<32x128xf32>
    %c0_5 = arith.constant 0 : index
    %c0_6 = arith.constant 0 : index
    %c0_7 = arith.constant 0 : index
    %15 = vector.load %arg3[%c0_5, %c0_6, %c0_7] : memref<8x32x128xf32, #tpu.memory_space<vmem>>, vector<1x32x128xf32>
    %16 = vector.shape_cast %15 : vector<1x32x128xf32> to vector<32x128xf32>
    %17 = vector.shape_cast %14 : vector<32x128xf32> to vector<1x32x128xf32>
    tpu.vector_store %arg3[%c0_5, %c0_6, %c0_7], %17 {strides = array<i32>} : memref<8x32x128xf32, #tpu.memory_space<vmem>>, vector<1x32x128xf32>,
    %c1 = arith.constant 1 : index
    %18 = memref.load %arg1[%c1] : memref<8xf32, #tpu.memory_space<smem>>
    %19 = vector.broadcast %18 : f32 to vector<32x128xf32>
    %20 = arith.mulf %0, %19 : vector<32x128xf32>
    %c1_8 = arith.constant 1 : index
    %21 = memref.load %arg2[%c1_8] : memref<8xf32, #tpu.memory_space<smem>>
    %22 = vector.broadcast %21 : f32 to vector<32x128xf32>
    %23 = arith.addf %20, %22 : vector<32x128xf32>
    %cst_9 = arith.constant 5.000000e-01 : f32
    %24 = vector.broadcast %cst_9 : f32 to vector<32x128xf32>
    %25 = arith.mulf %24, %23 : vector<32x128xf32>
    %26 = math.tanh %25 : vector<32x128xf32>
    %cst_10 = arith.constant 5.000000e-01 : f32
    %27 = vector.broadcast %cst_10 : f32 to vector<32x128xf32>
    %28 = arith.mulf %27, %26 : vector<32x128xf32>
    %cst_11 = arith.constant 5.000000e-01 : f32
    %29 = vector.broadcast %cst_11 : f32 to vector<32x128xf32>
    %30 = arith.addf %28, %29 : vector<32x128xf32>
    %31 = arith.addf %23, %30 : vector<32x128xf32>
    %c1_12 = arith.constant 1 : index
    %c0_13 = arith.constant 0 : index
    %c0_14 = arith.constant 0 : index
    %32 = vector.load %arg3[%c1_12, %c0_13, %c0_14] : memref<8x32x128xf32, #tpu.memory_space<vmem>>, vector<1x32x128xf32>
    %33 = vector.shape_cast %32 : vector<1x32x128xf32> to vector<32x128xf32>
    %34 = vector.shape_cast %31 : vector<32x128xf32> to vector<1x32x128xf32>
    tpu.vector_store %arg3[%c1_12, %c0_13, %c0_14], %34 {strides = array<i32>} : memref<8x32x128xf32, #tpu.memory_space<vmem>>, vector<1x32x128xf32>,
    %c2 = arith.constant 2 : index
    %35 = memref.load %arg1[%c2] : memref<8xf32, #tpu.memory_space<smem>>
    %36 = vector.broadcast %35 : f32 to vector<32x128xf32>
    %37 = arith.mulf %0, %36 : vector<32x128xf32>
    %c2_15 = arith.constant 2 : index
    %38 = memref.load %arg2[%c2_15] : memref<8xf32, #tpu.memory_space<smem>>
    %39 = vector.broadcast %38 : f32 to vector<32x128xf32>
    %40 = arith.addf %37, %39 : vector<32x128xf32>
    %cst_16 = arith.constant 5.000000e-01 : f32
    %41 = vector.broadcast %cst_16 : f32 to vector<32x128xf32>
    %42 = arith.mulf %41, %40 : vector<32x128xf32>
    %43 = math.tanh %42 : vector<32x128xf32>
    %cst_17 = arith.constant 5.000000e-01 : f32
    %44 = vector.broadcast %cst_17 : f32 to vector<32x128xf32>
    %45 = arith.mulf %44, %43 : vector<32x128xf32>
    %cst_18 = arith.constant 5.000000e-01 : f32
    %46 = vector.broadcast %cst_18 : f32 to vector<32x128xf32>
    %47 = arith.addf %45, %46 : vector<32x128xf32>
    %48 = arith.addf %40, %47 : vector<32x128xf32>
    %c2_19 = arith.constant 2 : index
    %c0_20 = arith.constant 0 : index
    %c0_21 = arith.constant 0 : index
    %49 = vector.load %arg3[%c2_19, %c0_20, %c0_21] : memref<8x32x128xf32, #tpu.memory_space<vmem>>, vector<1x32x128xf32>
    %50 = vector.shape_cast %49 : vector<1x32x128xf32> to vector<32x128xf32>
    %51 = vector.shape_cast %48 : vector<32x128xf32> to vector<1x32x128xf32>
    tpu.vector_store %arg3[%c2_19, %c0_20, %c0_21], %51 {strides = array<i32>} : memref<8x32x128xf32, #tpu.memory_space<vmem>>, vector<1x32x128xf32>,
    %c3 = arith.constant 3 : index
    %52 = memref.load %arg1[%c3] : memref<8xf32, #tpu.memory_space<smem>>
    %53 = vector.broadcast %52 : f32 to vector<32x128xf32>
    %54 = arith.mulf %0, %53 : vector<32x128xf32>
    %c3_22 = arith.constant 3 : index
    %55 = memref.load %arg2[%c3_22] : memref<8xf32, #tpu.memory_space<smem>>
    %56 = vector.broadcast %55 : f32 to vector<32x128xf32>
    %57 = arith.addf %54, %56 : vector<32x128xf32>
    %cst_23 = arith.constant 5.000000e-01 : f32
    %58 = vector.broadcast %cst_23 : f32 to vector<32x128xf32>
    %59 = arith.mulf %58, %57 : vector<32x128xf32>
    %60 = math.tanh %59 : vector<32x128xf32>
    %cst_24 = arith.constant 5.000000e-01 : f32
    %61 = vector.broadcast %cst_24 : f32 to vector<32x128xf32>
    %62 = arith.mulf %61, %60 : vector<32x128xf32>
    %cst_25 = arith.constant 5.000000e-01 : f32
    %63 = vector.broadcast %cst_25 : f32 to vector<32x128xf32>
    %64 = arith.addf %62, %63 : vector<32x128xf32>
    %65 = arith.addf %57, %64 : vector<32x128xf32>
    %c3_26 = arith.constant 3 : index
    %c0_27 = arith.constant 0 : index
    %c0_28 = arith.constant 0 : index
    %66 = vector.load %arg3[%c3_26, %c0_27, %c0_28] : memref<8x32x128xf32, #tpu.memory_space<vmem>>, vector<1x32x128xf32>
    %67 = vector.shape_cast %66 : vector<1x32x128xf32> to vector<32x128xf32>
    %68 = vector.shape_cast %65 : vector<32x128xf32> to vector<1x32x128xf32>
    tpu.vector_store %arg3[%c3_26, %c0_27, %c0_28], %68 {strides = array<i32>} : memref<8x32x128xf32, #tpu.memory_space<vmem>>, vector<1x32x128xf32>,
    %c4 = arith.constant 4 : index
    %69 = memref.load %arg1[%c4] : memref<8xf32, #tpu.memory_space<smem>>
    %70 = vector.broadcast %69 : f32 to vector<32x128xf32>
    %71 = arith.mulf %0, %70 : vector<32x128xf32>
    %c4_29 = arith.constant 4 : index
    %72 = memref.load %arg2[%c4_29] : memref<8xf32, #tpu.memory_space<smem>>
    %73 = vector.broadcast %72 : f32 to vector<32x128xf32>
    %74 = arith.addf %71, %73 : vector<32x128xf32>
    %cst_30 = arith.constant 5.000000e-01 : f32
    %75 = vector.broadcast %cst_30 : f32 to vector<32x128xf32>
    %76 = arith.mulf %75, %74 : vector<32x128xf32>
    %77 = math.tanh %76 : vector<32x128xf32>
    %cst_31 = arith.constant 5.000000e-01 : f32
    %78 = vector.broadcast %cst_31 : f32 to vector<32x128xf32>
    %79 = arith.mulf %78, %77 : vector<32x128xf32>
    %cst_32 = arith.constant 5.000000e-01 : f32
    %80 = vector.broadcast %cst_32 : f32 to vector<32x128xf32>
    %81 = arith.addf %79, %80 : vector<32x128xf32>
    %82 = arith.addf %74, %81 : vector<32x128xf32>
    %c4_33 = arith.constant 4 : index
    %c0_34 = arith.constant 0 : index
    %c0_35 = arith.constant 0 : index
    %83 = vector.load %arg3[%c4_33, %c0_34, %c0_35] : memref<8x32x128xf32, #tpu.memory_space<vmem>>, vector<1x32x128xf32>
    %84 = vector.shape_cast %83 : vector<1x32x128xf32> to vector<32x128xf32>
    %85 = vector.shape_cast %82 : vector<32x128xf32> to vector<1x32x128xf32>
    tpu.vector_store %arg3[%c4_33, %c0_34, %c0_35], %85 {strides = array<i32>} : memref<8x32x128xf32, #tpu.memory_space<vmem>>, vector<1x32x128xf32>,
    %c5 = arith.constant 5 : index
    %86 = memref.load %arg1[%c5] : memref<8xf32, #tpu.memory_space<smem>>
    %87 = vector.broadcast %86 : f32 to vector<32x128xf32>
    %88 = arith.mulf %0, %87 : vector<32x128xf32>
    %c5_36 = arith.constant 5 : index
    %89 = memref.load %arg2[%c5_36] : memref<8xf32, #tpu.memory_space<smem>>
    %90 = vector.broadcast %89 : f32 to vector<32x128xf32>
    %91 = arith.addf %88, %90 : vector<32x128xf32>
    %cst_37 = arith.constant 5.000000e-01 : f32
    %92 = vector.broadcast %cst_37 : f32 to vector<32x128xf32>
    %93 = arith.mulf %92, %91 : vector<32x128xf32>
    %94 = math.tanh %93 : vector<32x128xf32>
    %cst_38 = arith.constant 5.000000e-01 : f32
    %95 = vector.broadcast %cst_38 : f32 to vector<32x128xf32>
    %96 = arith.mulf %95, %94 : vector<32x128xf32>
    %cst_39 = arith.constant 5.000000e-01 : f32
    %97 = vector.broadcast %cst_39 : f32 to vector<32x128xf32>
    %98 = arith.addf %96, %97 : vector<32x128xf32>
    %99 = arith.addf %91, %98 : vector<32x128xf32>
    %c5_40 = arith.constant 5 : index
    %c0_41 = arith.constant 0 : index
    %c0_42 = arith.constant 0 : index
    %100 = vector.load %arg3[%c5_40, %c0_41, %c0_42] : memref<8x32x128xf32, #tpu.memory_space<vmem>>, vector<1x32x128xf32>
    %101 = vector.shape_cast %100 : vector<1x32x128xf32> to vector<32x128xf32>
    %102 = vector.shape_cast %99 : vector<32x128xf32> to vector<1x32x128xf32>
    tpu.vector_store %arg3[%c5_40, %c0_41, %c0_42], %102 {strides = array<i32>} : memref<8x32x128xf32, #tpu.memory_space<vmem>>, vector<1x32x128xf32>,
    %c6 = arith.constant 6 : index
    %103 = memref.load %arg1[%c6] : memref<8xf32, #tpu.memory_space<smem>>
    %104 = vector.broadcast %103 : f32 to vector<32x128xf32>
    %105 = arith.mulf %0, %104 : vector<32x128xf32>
    %c6_43 = arith.constant 6 : index
    %106 = memref.load %arg2[%c6_43] : memref<8xf32, #tpu.memory_space<smem>>
    %107 = vector.broadcast %106 : f32 to vector<32x128xf32>
    %108 = arith.addf %105, %107 : vector<32x128xf32>
    %cst_44 = arith.constant 5.000000e-01 : f32
    %109 = vector.broadcast %cst_44 : f32 to vector<32x128xf32>
    %110 = arith.mulf %109, %108 : vector<32x128xf32>
    %111 = math.tanh %110 : vector<32x128xf32>
    %cst_45 = arith.constant 5.000000e-01 : f32
    %112 = vector.broadcast %cst_45 : f32 to vector<32x128xf32>
    %113 = arith.mulf %112, %111 : vector<32x128xf32>
    %cst_46 = arith.constant 5.000000e-01 : f32
    %114 = vector.broadcast %cst_46 : f32 to vector<32x128xf32>
    %115 = arith.addf %113, %114 : vector<32x128xf32>
    %116 = arith.addf %108, %115 : vector<32x128xf32>
    %c6_47 = arith.constant 6 : index
    %c0_48 = arith.constant 0 : index
    %c0_49 = arith.constant 0 : index
    %117 = vector.load %arg3[%c6_47, %c0_48, %c0_49] : memref<8x32x128xf32, #tpu.memory_space<vmem>>, vector<1x32x128xf32>
    %118 = vector.shape_cast %117 : vector<1x32x128xf32> to vector<32x128xf32>
    %119 = vector.shape_cast %116 : vector<32x128xf32> to vector<1x32x128xf32>
    tpu.vector_store %arg3[%c6_47, %c0_48, %c0_49], %119 {strides = array<i32>} : memref<8x32x128xf32, #tpu.memory_space<vmem>>, vector<1x32x128xf32>,
    %c7 = arith.constant 7 : index
    %120 = memref.load %arg1[%c7] : memref<8xf32, #tpu.memory_space<smem>>
    %121 = vector.broadcast %120 : f32 to vector<32x128xf32>
    %122 = arith.mulf %0, %121 : vector<32x128xf32>
    %c7_50 = arith.constant 7 : index
    %123 = memref.load %arg2[%c7_50] : memref<8xf32, #tpu.memory_space<smem>>
    %124 = vector.broadcast %123 : f32 to vector<32x128xf32>
    %125 = arith.addf %122, %124 : vector<32x128xf32>
    %cst_51 = arith.constant 5.000000e-01 : f32
    %126 = vector.broadcast %cst_51 : f32 to vector<32x128xf32>
    %127 = arith.mulf %126, %125 : vector<32x128xf32>
    %128 = math.tanh %127 : vector<32x128xf32>
    %cst_52 = arith.constant 5.000000e-01 : f32
    %129 = vector.broadcast %cst_52 : f32 to vector<32x128xf32>
    %130 = arith.mulf %129, %128 : vector<32x128xf32>
    %cst_53 = arith.constant 5.000000e-01 : f32
    %131 = vector.broadcast %cst_53 : f32 to vector<32x128xf32>
    %132 = arith.addf %130, %131 : vector<32x128xf32>
    %133 = arith.addf %125, %132 : vector<32x128xf32>
    %c7_54 = arith.constant 7 : index
    %c0_55 = arith.constant 0 : index
    %c0_56 = arith.constant 0 : index
    %134 = vector.load %arg3[%c7_54, %c0_55, %c0_56] : memref<8x32x128xf32, #tpu.memory_space<vmem>>, vector<1x32x128xf32>
    %135 = vector.shape_cast %134 : vector<1x32x128xf32> to vector<32x128xf32>
    %136 = vector.shape_cast %133 : vector<32x128xf32> to vector<1x32x128xf32>
    tpu.vector_store %arg3[%c7_54, %c0_55, %c0_56], %136 {strides = array<i32>} : memref<8x32x128xf32, #tpu.memory_space<vmem>>, vector<1x32x128xf32>,
    return
  }
}

</mosaic_0001>

<llo_original>
// kernel: squeeze.2
$region0: #{squeeze.2}
  %s0 = inlined_call_operand.vmem [shape: f32[1,1,62,62], index: 0, kind: input, shape index: {}]
  %s1 = inlined_call_operand.vmem [shape: f32[3844], index: 1, kind: output, shape index: {}]
  %v2 = vld [vmem:[%s0] sm:$0x1]
  %vm3 = vcmask 506880
  %4 = vst.msk [vmem:[%s1] sm:$0x1] %vm3, %v2
  %s5 = scalar_lea.vmem %s0, 33
  %v6 = vld [vmem:[%s5] sm:$0x1]
  %s7 = scalar_lea.vmem %s0, 33
  %v8 = vld [vmem:[%s7] sm:$0x1]
  %vm9 = vcmask 15360
  %v10 = vsel %vm9, %v8, %v6
  %11 = vrot.lane.b32.xlu0 %v10, 126
  %v12 = vpop.permute.xlu0 %11
  %vm13 = vcmask 490496
  %s14 = scalar_lea.vmem %s1, 16
  %15 = vst.msk [vmem:[%s14] sm:$0x1] %vm13, %v12
  %vm16 = vcmask 1048560
  %s17 = scalar_lea.vmem %s1, 15
  %18 = vst.msk [vmem:[%s17] sm:$0x1] %vm16, %v12
  %s19 = scalar_lea.vmem %s0, 2
  %v20 = vld [vmem:[%s19] sm:$0x1]
  %s21 = scalar_lea.vmem %s0, 2
  %v22 = vld [vmem:[%s21] sm:$0x1]
  %vm23 = vcmask 31744
  %v24 = vsel %vm23, %v22, %v20
  %25 = vrot.lane.b32.xlu0 %v24, 124
  %v26 = vpop.permute.xlu0 %25
  %vm27 = vcmask 474112
  %s28 = scalar_lea.vmem %s1, 1
  %29 = vst.msk [vmem:[%s28] sm:$0x1] %vm27, %v26
  %vm30 = vcmask 1048544
  %31 = vst.msk [vmem:[%s1] sm:$0x1] %vm30, %v26
  %s32 = scalar_lea.vmem %s0, 35
  %v33 = vld [vmem:[%s32] sm:$0x1]
  %s34 = scalar_lea.vmem %s0, 35
  %v35 = vld [vmem:[%s34] sm:$0x1]
  %vm36 = vcmask 48128
  %v37 = vsel %vm36, %v35, %v33
  %38 = vrot.lane.b32.xlu0 %v37, 122
  %v39 = vpop.permute.xlu0 %38
  %vm40 = vcmask 457728
  %s41 = scalar_lea.vmem %s1, 17
  %42 = vst.msk [vmem:[%s41] sm:$0x1] %vm40, %v39
  %vm43 = vcmask 1048528
  %s44 = scalar_lea.vmem %s1, 16
  %45 = vst.msk [vmem:[%s44] sm:$0x1] %vm43, %v39
  %s46 = scalar_lea.vmem %s0, 4
  %v47 = vld [vmem:[%s46] sm:$0x1]
  %s48 = scalar_lea.vmem %s0, 4
  %v49 = vld [vmem:[%s48] sm:$0x1]
  %vm50 = vcmask 64512
  %v51 = vsel %vm50, %v49, %v47
  %52 = vrot.lane.b32.xlu0 %v51, 120
  %v53 = vpop.permute.xlu0 %52
  %vm54 = vcmask 441344
  %s55 = scalar_lea.vmem %s1, 2
  %56 = vst.msk [vmem:[%s55] sm:$0x1] %vm54, %v53
  %vm57 = vcmask 1048512
  %s58 = scalar_lea.vmem %s1, 1
  %59 = vst.msk [vmem:[%s58] sm:$0x1] %vm57, %v53
  %s60 = scalar_lea.vmem %s0, 37
  %v61 = vld [vmem:[%s60] sm:$0x1]
  %s62 = scalar_lea.vmem %s0, 37
  %v63 = vld [vmem:[%s62] sm:$0x1]
  %vm64 = vcmask 80896
  %v65 = vsel %vm64, %v63, %v61
  %66 = vrot.lane.b32.xlu0 %v65, 118
  %v67 = vpop.permute.xlu0 %66
  %vm68 = vcmask 424960
  %s69 = scalar_lea.vmem %s1, 18
  %70 = vst.msk [vmem:[%s69] sm:$0x1] %vm68, %v67
  %vm71 = vcmask 1048496
  %s72 = scalar_lea.vmem %s1, 17
  %73 = vst.msk [vmem:[%s72] sm:$0x1] %vm71, %v67
  %s74 = scalar_lea.vmem %s0, 6
  %v75 = vld [vmem:[%s74] sm:$0x1]
  %s76 = scalar_lea.vmem %s0, 6
  %v77 = vld [vmem:[%s76] sm:$0x1]
  %vm78 = vcmask 97280
  %v79 = vsel %vm78, %v77, %v75
  %80 = vrot.lane.b32.xlu0 %v79, 116
  %v81 = vpop.permute.xlu0 %80
  %vm82 = vcmask 408576
  %s83 = scalar_lea.vmem %s1, 3
  %84 = vst.msk [vmem:[%s83] sm:$0x1] %vm82, %v81
  %vm85 = vcmask 1048480
  %s86 = scalar_lea.vmem %s1, 2
  %87 = vst.msk [vmem:[%s86] sm:$0x1] %vm85, %v81
  %s88 = scalar_lea.vmem %s0, 39
  %v89 = vld [vmem:[%s88] sm:$0x1]
  %s90 = scalar_lea.vmem %s0, 39
  %v91 = vld [vmem:[%s90] sm:$0x1]
  %vm92 = vcmask 113664
  %v93 = vsel %vm92, %v91, %v89
  %94 = vrot.lane.b32.xlu0 %v93, 114
  %v95 = vpop.permute.xlu0 %94
  %vm96 = vcmask 392192
  %s97 = scalar_lea.vmem %s1, 19
  %98 = vst.msk [vmem:[%s97] sm:$0x1] %vm96, %v95
  %vm99 = vcmask 1048464
  %s100 = scalar_lea.vmem %s1, 18
  %101 = vst.msk [vmem:[%s100] sm:$0x1] %vm99, %v95
  %s102 = scalar_lea.vmem %s0, 8
  %v103 = vld [vmem:[%s102] sm:$0x1]
  %s104 = scalar_lea.vmem %s0, 8
  %v105 = vld [vmem:[%s104] sm:$0x1]
  %vm106 = vcmask 130048
  %v107 = vsel %vm106, %v105, %v103
  %108 = vrot.lane.b32.xlu0 %v107, 112
  %v109 = vpop.permute.xlu0 %108
  %vm110 = vcmask 375808
  %s111 = scalar_lea.vmem %s1, 4
  %112 = vst.msk [vmem:[%s111] sm:$0x1] %vm110, %v109
  %vm113 = vcmask 1048448
  %s114 = scalar_lea.vmem %s1, 3
  %115 = vst.msk [vmem:[%s114] sm:$0x1] %vm113, %v109
  %s116 = scalar_lea.vmem %s0, 41
  %v117 = vld [vmem:[%s116] sm:$0x1]
  %s118 = scalar_lea.vmem %s0, 41
  %v119 = vld [vmem:[%s118] sm:$0x1]
  %vm120 = vcmask 146432
  %v121 = vsel %vm120, %v119, %v117
  %122 = vrot.lane.b32.xlu0 %v121, 110
  %v123 = vpop.permute.xlu0 %122
  %vm124 = vcmask 359424
  %s125 = scalar_lea.vmem %s1, 20
  %126 = vst.msk [vmem:[%s125] sm:$0x1] %vm124, %v123
  %vm127 = vcmask 1048432
  %s128 = scalar_lea.vmem %s1, 19
  %129 = vst.msk [vmem:[%s128] sm:$0x1] %vm127, %v123
  %s130 = scalar_lea.vmem %s0, 10
  %v131 = vld [vmem:[%s130] sm:$0x1]
  %s132 = scalar_lea.vmem %s0, 10
  %v133 = vld [vmem:[%s132] sm:$0x1]
  %vm134 = vcmask 162816
  %v135 = vsel %vm134, %v133, %v131
  %136 = vrot.lane.b32.xlu0 %v135, 108
  %v137 = vpop.permute.xlu0 %136
  %vm138 = vcmask 343040
  %s139 = scalar_lea.vmem %s1, 5
  %140 = vst.msk [vmem:[%s139] sm:$0x1] %vm138, %v137
  %vm141 = vcmask 1048416
  %s142 = scalar_lea.vmem %s1, 4
  %143 = vst.msk [vmem:[%s142] sm:$0x1] %vm141, %v137
  %s144 = scalar_lea.vmem %s0, 43
  %v145 = vld [vmem:[%s144] sm:$0x1]
  %s146 = scalar_lea.vmem %s0, 43
  %v147 = vld [vmem:[%s146] sm:$0x1]
  %vm148 = vcmask 179200
  %v149 = vsel %vm148, %v147, %v145
  %150 = vrot.lane.b32.xlu0 %v149, 106
  %v151 = vpop.permute.xlu0 %150
  %vm152 = vcmask 326656
  %s153 = scalar_lea.vmem %s1, 21
  %154 = vst.msk [vmem:[%s153] sm:$0x1] %vm152, %v151
  %vm155 = vcmask 1048400
  %s156 = scalar_lea.vmem %s1, 20
  %157 = vst.msk [vmem:[%s156] sm:$0x1] %vm155, %v151
  %s158 = scalar_lea.vmem %s0, 12
  %v159 = vld [vmem:[%s158] sm:$0x1]
  %s160 = scalar_lea.vmem %s0, 12
  %v161 = vld [vmem:[%s160] sm:$0x1]
  %vm162 = vcmask 195584
  %v163 = vsel %vm162, %v161, %v159
  %164 = vrot.lane.b32.xlu0 %v163, 104
  %v165 = vpop.permute.xlu0 %164
  %vm166 = vcmask 310272
  %s167 = scalar_lea.vmem %s1, 6
  %168 = vst.msk [vmem:[%s167] sm:$0x1] %vm166, %v165
  %vm169 = vcmask 1048384
  %s170 = scalar_lea.vmem %s1, 5
  %171 = vst.msk [vmem:[%s170] sm:$0x1] %vm169, %v165
  %s172 = scalar_lea.vmem %s0, 45
  %v173 = vld [vmem:[%s172] sm:$0x1]
  %s174 = scalar_lea.vmem %s0, 45
  %v175 = vld [vmem:[%s174] sm:$0x1]
  %vm176 = vcmask 211968
  %v177 = vsel %vm176, %v175, %v173
  %178 = vrot.lane.b32.xlu0 %v177, 102
  %v179 = vpop.permute.xlu0 %178
  %vm180 = vcmask 293888
  %s181 = scalar_lea.vmem %s1, 22
  %182 = vst.msk [vmem:[%s181] sm:$0x1] %vm180, %v179
  %vm183 = vcmask 1048368
  %s184 = scalar_lea.vmem %s1, 21
  %185 = vst.msk [vmem:[%s184] sm:$0x1] %vm183, %v179
  %s186 = scalar_lea.vmem %s0, 14
  %v187 = vld [vmem:[%s186] sm:$0x1]
  %s188 = scalar_lea.vmem %s0, 14
  %v189 = vld [vmem:[%s188] sm:$0x1]
  %vm190 = vcmask 228352
  %v191 = vsel %vm190, %v189, %v187
  %192 = vrot.lane.b32.xlu0 %v191, 100
  %v193 = vpop.permute.xlu0 %192
  %vm194 = vcmask 277504
  %s195 = scalar_lea.vmem %s1, 7
  %196 = vst.msk [vmem:[%s195] sm:$0x1] %vm194, %v193
  %vm197 = vcmask 1048352
  %s198 = scalar_lea.vmem %s1, 6
  %199 = vst.msk [vmem:[%s198] sm:$0x1] %vm197, %v193
  %s200 = scalar_lea.vmem %s0, 47
  %v201 = vld [vmem:[%s200] sm:$0x1]
  %s202 = scalar_lea.vmem %s0, 47
  %v203 = vld [vmem:[%s202] sm:$0x1]
  %vm204 = vcmask 244736
  %v205 = vsel %vm204, %v203, %v201
  %206 = vrot.lane.b32.xlu0 %v205, 98
  %v207 = vpop.permute.xlu0 %206
  %vm208 = vcmask 261120
  %s209 = scalar_lea.vmem %s1, 23
  %210 = vst.msk [vmem:[%s209] sm:$0x1] %vm208, %v207
  %vm211 = vcmask 1048336
  %s212 = scalar_lea.vmem %s1, 22
  %213 = vst.msk [vmem:[%s212] sm:$0x1] %vm211, %v207
  %s214 = scalar_lea.vmem %s0, 16
  %v215 = vld [vmem:[%s214] sm:$0x1]
  %s216 = scalar_lea.vmem %s0, 16
  %v217 = vld [vmem:[%s216] sm:$0x1]
  %vm218 = vcmask 261120
  %v219 = vsel %vm218, %v217, %v215
  %220 = vrot.lane.b32.xlu0 %v219, 96
  %v221 = vpop.permute.xlu0 %220
  %vm222 = vcmask 244736
  %s223 = scalar_lea.vmem %s1, 8
  %224 = vst.msk [vmem:[%s223] sm:$0x1] %vm222, %v221
  %vm225 = vcmask 1048320
  %s226 = scalar_lea.vmem %s1, 7
  %227 = vst.msk [vmem:[%s226] sm:$0x1] %vm225, %v221
  %s228 = scalar_lea.vmem %s0, 49
  %v229 = vld [vmem:[%s228] sm:$0x1]
  %s230 = scalar_lea.vmem %s0, 49
  %v231 = vld [vmem:[%s230] sm:$0x1]
  %vm232 = vcmask 277504
  %v233 = vsel %vm232, %v231, %v229
  %234 = vrot.lane.b32.xlu0 %v233, 94
  %v235 = vpop.permute.xlu0 %234
  %vm236 = vcmask 228352
  %s237 = scalar_lea.vmem %s1, 24
  %238 = vst.msk [vmem:[%s237] sm:$0x1] %vm236, %v235
  %vm239 = vcmask 1048304
  %s240 = scalar_lea.vmem %s1, 23
  %241 = vst.msk [vmem:[%s240] sm:$0x1] %vm239, %v235
  %s242 = scalar_lea.vmem %s0, 18
  %v243 = vld [vmem:[%s242] sm:$0x1]
  %s244 = scalar_lea.vmem %s0, 18
  %v245 = vld [vmem:[%s244] sm:$0x1]
  %vm246 = vcmask 293888
  %v247 = vsel %vm246, %v245, %v243
  %248 = vrot.lane.b32.xlu0 %v247, 92
  %v249 = vpop.permute.xlu0 %248
  %vm250 = vcmask 211968
  %s251 = scalar_lea.vmem %s1, 9
  %252 = vst.msk [vmem:[%s251] sm:$0x1] %vm250, %v249
  %vm253 = vcmask 1048288
  %s254 = scalar_lea.vmem %s1, 8
  %255 = vst.msk [vmem:[%s254] sm:$0x1] %vm253, %v249
  %s256 = scalar_lea.vmem %s0, 51
  %v257 = vld [vmem:[%s256] sm:$0x1]
  %s258 = scalar_lea.vmem %s0, 51
  %v259 = vld [vmem:[%s258] sm:$0x1]
  %vm260 = vcmask 310272
  %v261 = vsel %vm260, %v259, %v257
  %262 = vrot.lane.b32.xlu0 %v261, 90
  %v263 = vpop.permute.xlu0 %262
  %vm264 = vcmask 195584
  %s265 = scalar_lea.vmem %s1, 25
  %266 = vst.msk [vmem:[%s265] sm:$0x1] %vm264, %v263
  %vm267 = vcmask 1048272
  %s268 = scalar_lea.vmem %s1, 24
  %269 = vst.msk [vmem:[%s268] sm:$0x1] %vm267, %v263
  %s270 = scalar_lea.vmem %s0, 20
  %v271 = vld [vmem:[%s270] sm:$0x1]
  %s272 = scalar_lea.vmem %s0, 20
  %v273 = vld [vmem:[%s272] sm:$0x1]
  %vm274 = vcmask 326656
  %v275 = vsel %vm274, %v273, %v271
  %276 = vrot.lane.b32.xlu0 %v275, 88
  %v277 = vpop.permute.xlu0 %276
  %vm278 = vcmask 179200
  %s279 = scalar_lea.vmem %s1, 10
  %280 = vst.msk [vmem:[%s279] sm:$0x1] %vm278, %v277
  %vm281 = vcmask 1048256
  %s282 = scalar_lea.vmem %s1, 9
  %283 = vst.msk [vmem:[%s282] sm:$0x1] %vm281, %v277
  %s284 = scalar_lea.vmem %s0, 53
  %v285 = vld [vmem:[%s284] sm:$0x1]
  %s286 = scalar_lea.vmem %s0, 53
  %v287 = vld [vmem:[%s286] sm:$0x1]
  %vm288 = vcmask 343040
  %v289 = vsel %vm288, %v287, %v285
  %290 = vrot.lane.b32.xlu0 %v289, 86
  %v291 = vpop.permute.xlu0 %290
  %vm292 = vcmask 162816
  %s293 = scalar_lea.vmem %s1, 26
  %294 = vst.msk [vmem:[%s293] sm:$0x1] %vm292, %v291
  %vm295 = vcmask 1048240
  %s296 = scalar_lea.vmem %s1, 25
  %297 = vst.msk [vmem:[%s296] sm:$0x1] %vm295, %v291
  %s298 = scalar_lea.vmem %s0, 22
  %v299 = vld [vmem:[%s298] sm:$0x1]
  %s300 = scalar_lea.vmem %s0, 22
  %v301 = vld [vmem:[%s300] sm:$0x1]
  %vm302 = vcmask 359424
  %v303 = vsel %vm302, %v301, %v299
  %304 = vrot.lane.b32.xlu0 %v303, 84
  %v305 = vpop.permute.xlu0 %304
  %vm306 = vcmask 146432
  %s307 = scalar_lea.vmem %s1, 11
  %308 = vst.msk [vmem:[%s307] sm:$0x1] %vm306, %v305
  %vm309 = vcmask 1048224
  %s310 = scalar_lea.vmem %s1, 10
  %311 = vst.msk [vmem:[%s310] sm:$0x1] %vm309, %v305
  %s312 = scalar_lea.vmem %s0, 55
  %v313 = vld [vmem:[%s312] sm:$0x1]
  %s314 = scalar_lea.vmem %s0, 55
  %v315 = vld [vmem:[%s314] sm:$0x1]
  %vm316 = vcmask 375808
  %v317 = vsel %vm316, %v315, %v313
  %318 = vrot.lane.b32.xlu0 %v317, 82
  %v319 = vpop.permute.xlu0 %318
  %vm320 = vcmask 130048
  %s321 = scalar_lea.vmem %s1, 27
  %322 = vst.msk [vmem:[%s321] sm:$0x1] %vm320, %v319
  %vm323 = vcmask 1048208
  %s324 = scalar_lea.vmem %s1, 26
  %325 = vst.msk [vmem:[%s324] sm:$0x1] %vm323, %v319
  %s326 = scalar_lea.vmem %s0, 24
  %v327 = vld [vmem:[%s326] sm:$0x1]
  %s328 = scalar_lea.vmem %s0, 24
  %v329 = vld [vmem:[%s328] sm:$0x1]
  %vm330 = vcmask 392192
  %v331 = vsel %vm330, %v329, %v327
  %332 = vrot.lane.b32.xlu0 %v331, 80
  %v333 = vpop.permute.xlu0 %332
  %vm334 = vcmask 113664
  %s335 = scalar_lea.vmem %s1, 12
  %336 = vst.msk [vmem:[%s335] sm:$0x1] %vm334, %v333
  %vm337 = vcmask 1048192
  %s338 = scalar_lea.vmem %s1, 11
  %339 = vst.msk [vmem:[%s338] sm:$0x1] %vm337, %v333
  %s340 = scalar_lea.vmem %s0, 57
  %v341 = vld [vmem:[%s340] sm:$0x1]
  %s342 = scalar_lea.vmem %s0, 57
  %v343 = vld [vmem:[%s342] sm:$0x1]
  %vm344 = vcmask 408576
  %v345 = vsel %vm344, %v343, %v341
  %346 = vrot.lane.b32.xlu0 %v345, 78
  %v347 = vpop.permute.xlu0 %346
  %vm348 = vcmask 97280
  %s349 = scalar_lea.vmem %s1, 28
  %350 = vst.msk [vmem:[%s349] sm:$0x1] %vm348, %v347
  %vm351 = vcmask 1048176
  %s352 = scalar_lea.vmem %s1, 27
  %353 = vst.msk [vmem:[%s352] sm:$0x1] %vm351, %v347
  %s354 = scalar_lea.vmem %s0, 26
  %v355 = vld [vmem:[%s354] sm:$0x1]
  %s356 = scalar_lea.vmem %s0, 26
  %v357 = vld [vmem:[%s356] sm:$0x1]
  %vm358 = vcmask 424960
  %v359 = vsel %vm358, %v357, %v355
  %360 = vrot.lane.b32.xlu0 %v359, 76
  %v361 = vpop.permute.xlu0 %360
  %vm362 = vcmask 80896
  %s363 = scalar_lea.vmem %s1, 13
  %364 = vst.msk [vmem:[%s363] sm:$0x1] %vm362, %v361
  %vm365 = vcmask 1048160
  %s366 = scalar_lea.vmem %s1, 12
  %367 = vst.msk [vmem:[%s366] sm:$0x1] %vm365, %v361
  %s368 = scalar_lea.vmem %s0, 59
  %v369 = vld [vmem:[%s368] sm:$0x1]
  %s370 = scalar_lea.vmem %s0, 59
  %v371 = vld [vmem:[%s370] sm:$0x1]
  %vm372 = vcmask 441344
  %v373 = vsel %vm372, %v371, %v369
  %374 = vrot.lane.b32.xlu0 %v373, 74
  %v375 = vpop.permute.xlu0 %374
  %vm376 = vcmask 64512
  %s377 = scalar_lea.vmem %s1, 29
  %378 = vst.msk [vmem:[%s377] sm:$0x1] %vm376, %v375
  %vm379 = vcmask 1048144
  %s380 = scalar_lea.vmem %s1, 28
  %381 = vst.msk [vmem:[%s380] sm:$0x1] %vm379, %v375
  %s382 = scalar_lea.vmem %s0, 28
  %v383 = vld [vmem:[%s382] sm:$0x1]
  %s384 = scalar_lea.vmem %s0, 28
  %v385 = vld [vmem:[%s384] sm:$0x1]
  %vm386 = vcmask 457728
  %v387 = vsel %vm386, %v385, %v383
  %388 = vrot.lane.b32.xlu0 %v387, 72
  %v389 = vpop.permute.xlu0 %388
  %vm390 = vcmask 48128
  %s391 = scalar_lea.vmem %s1, 14
  %392 = vst.msk [vmem:[%s391] sm:$0x1] %vm390, %v389
  %vm393 = vcmask 1048128
  %s394 = scalar_lea.vmem %s1, 13
  %395 = vst.msk [vmem:[%s394] sm:$0x1] %vm393, %v389
  %s396 = scalar_lea.vmem %s0, 61
  %v397 = vld [vmem:[%s396] sm:$0x1]
  %s398 = scalar_lea.vmem %s0, 61
  %v399 = vld [vmem:[%s398] sm:$0x1]
  %vm400 = vcmask 474112
  %v401 = vsel %vm400, %v399, %v397
  %402 = vrot.lane.b32.xlu0 %v401, 70
  %v403 = vpop.permute.xlu0 %402
  %vm404 = vcmask 31744
  %s405 = scalar_lea.vmem %s1, 30
  %406 = vst.msk [vmem:[%s405] sm:$0x1] %vm404, %v403
  %vm407 = vcmask 1048112
  %s408 = scalar_lea.vmem %s1, 29
  %409 = vst.msk [vmem:[%s408] sm:$0x1] %vm407, %v403
  %s410 = scalar_lea.vmem %s0, 30
  %v411 = vld [vmem:[%s410] sm:$0x1]
  %s412 = scalar_lea.vmem %s0, 30
  %v413 = vld [vmem:[%s412] sm:$0x1]
  %vm414 = vcmask 490496
  %v415 = vsel %vm414, %v413, %v411
  %416 = vrot.lane.b32.xlu0 %v415, 68
  %v417 = vpop.permute.xlu0 %416
  %vm418 = vcmask 15360
  %s419 = scalar_lea.vmem %s1, 15
  %420 = vst.msk [vmem:[%s419] sm:$0x1] %vm418, %v417
  %vm421 = vcmask 1048096
  %s422 = scalar_lea.vmem %s1, 14
  %423 = vst.msk [vmem:[%s422] sm:$0x1] %vm421, %v417
  %s424 = scalar_lea.vmem %s0, 32
  %v425 = vld [vmem:[%s424] sm:$0x1]
  %426 = vrot.lane.b32.xlu0 %v425, 64
  %v427 = vpop.permute.xlu0 %426
  %vm428 = vcmask 1031680
  %s429 = scalar_lea.vmem %s1, 15
  %430 = vst.msk [vmem:[%s429] sm:$0x1] %vm428, %v427
  %s431 = scalar_lea.vmem %s0, 1
  %v432 = vld [vmem:[%s431] sm:$0x1]
  %433 = vrot.lane.b32.xlu0 %v432, 62
  %v434 = vpop.permute.xlu0 %433
  %vm435 = vcmask 1015280
  %436 = vst.msk [vmem:[%s1] sm:$0x1] %vm435, %v434
  %s437 = scalar_lea.vmem %s0, 34
  %v438 = vld [vmem:[%s437] sm:$0x1]
  %439 = vrot.lane.b32.xlu0 %v438, 60
  %v440 = vpop.permute.xlu0 %439
  %vm441 = vcmask 998880
  %s442 = scalar_lea.vmem %s1, 16
  %443 = vst.msk [vmem:[%s442] sm:$0x1] %vm441, %v440
  %s444 = scalar_lea.vmem %s0, 3
  %v445 = vld [vmem:[%s444] sm:$0x1]
  %446 = vrot.lane.b32.xlu0 %v445, 58
  %v447 = vpop.permute.xlu0 %446
  %vm448 = vcmask 982480
  %s449 = scalar_lea.vmem %s1, 1
  %450 = vst.msk [vmem:[%s449] sm:$0x1] %vm448, %v447
  %s451 = scalar_lea.vmem %s0, 36
  %v452 = vld [vmem:[%s451] sm:$0x1]
  %453 = vrot.lane.b32.xlu0 %v452, 56
  %v454 = vpop.permute.xlu0 %453
  %vm455 = vcmask 966080
  %s456 = scalar_lea.vmem %s1, 17
  %457 = vst.msk [vmem:[%s456] sm:$0x1] %vm455, %v454
  %s458 = scalar_lea.vmem %s0, 5
  %v459 = vld [vmem:[%s458] sm:$0x1]
  %460 = vrot.lane.b32.xlu0 %v459, 54
  %v461 = vpop.permute.xlu0 %460
  %vm462 = vcmask 949680
  %s463 = scalar_lea.vmem %s1, 2
  %464 = vst.msk [vmem:[%s463] sm:$0x1] %vm462, %v461
  %s465 = scalar_lea.vmem %s0, 38
  %v466 = vld [vmem:[%s465] sm:$0x1]
  %467 = vrot.lane.b32.xlu0 %v466, 52
  %v468 = vpop.permute.xlu0 %467
  %vm469 = vcmask 933280
  %s470 = scalar_lea.vmem %s1, 18
  %471 = vst.msk [vmem:[%s470] sm:$0x1] %vm469, %v468
  %s472 = scalar_lea.vmem %s0, 7
  %v473 = vld [vmem:[%s472] sm:$0x1]
  %474 = vrot.lane.b32.xlu0 %v473, 50
  %v475 = vpop.permute.xlu0 %474
  %vm476 = vcmask 916880
  %s477 = scalar_lea.vmem %s1, 3
  %478 = vst.msk [vmem:[%s477] sm:$0x1] %vm476, %v475
  %s479 = scalar_lea.vmem %s0, 40
  %v480 = vld [vmem:[%s479] sm:$0x1]
  %481 = vrot.lane.b32.xlu0 %v480, 48
  %v482 = vpop.permute.xlu0 %481
  %vm483 = vcmask 900480
  %s484 = scalar_lea.vmem %s1, 19
  %485 = vst.msk [vmem:[%s484] sm:$0x1] %vm483, %v482
  %s486 = scalar_lea.vmem %s0, 9
  %v487 = vld [vmem:[%s486] sm:$0x1]
  %488 = vrot.lane.b32.xlu0 %v487, 46
  %v489 = vpop.permute.xlu0 %488
  %vm490 = vcmask 884080
  %s491 = scalar_lea.vmem %s1, 4
  %492 = vst.msk [vmem:[%s491] sm:$0x1] %vm490, %v489
  %s493 = scalar_lea.vmem %s0, 42
  %v494 = vld [vmem:[%s493] sm:$0x1]
  %495 = vrot.lane.b32.xlu0 %v494, 44
  %v496 = vpop.permute.xlu0 %495
  %vm497 = vcmask 867680
  %s498 = scalar_lea.vmem %s1, 20
  %499 = vst.msk [vmem:[%s498] sm:$0x1] %vm497, %v496
  %s500 = scalar_lea.vmem %s0, 11
  %v501 = vld [vmem:[%s500] sm:$0x1]
  %502 = vrot.lane.b32.xlu0 %v501, 42
  %v503 = vpop.permute.xlu0 %502
  %vm504 = vcmask 851280
  %s505 = scalar_lea.vmem %s1, 5
  %506 = vst.msk [vmem:[%s505] sm:$0x1] %vm504, %v503
  %s507 = scalar_lea.vmem %s0, 44
  %v508 = vld [vmem:[%s507] sm:$0x1]
  %509 = vrot.lane.b32.xlu0 %v508, 40
  %v510 = vpop.permute.xlu0 %509
  %vm511 = vcmask 834880
  %s512 = scalar_lea.vmem %s1, 21
  %513 = vst.msk [vmem:[%s512] sm:$0x1] %vm511, %v510
  %s514 = scalar_lea.vmem %s0, 13
  %v515 = vld [vmem:[%s514] sm:$0x1]
  %516 = vrot.lane.b32.xlu0 %v515, 38
  %v517 = vpop.permute.xlu0 %516
  %vm518 = vcmask 818480
  %s519 = scalar_lea.vmem %s1, 6
  %520 = vst.msk [vmem:[%s519] sm:$0x1] %vm518, %v517
  %s521 = scalar_lea.vmem %s0, 46
  %v522 = vld [vmem:[%s521] sm:$0x1]
  %523 = vrot.lane.b32.xlu0 %v522, 36
  %v524 = vpop.permute.xlu0 %523
  %vm525 = vcmask 802080
  %s526 = scalar_lea.vmem %s1, 22
  %527 = vst.msk [vmem:[%s526] sm:$0x1] %vm525, %v524
  %s528 = scalar_lea.vmem %s0, 15
  %v529 = vld [vmem:[%s528] sm:$0x1]
  %530 = vrot.lane.b32.xlu0 %v529, 34
  %v531 = vpop.permute.xlu0 %530
  %vm532 = vcmask 785680
  %s533 = scalar_lea.vmem %s1, 7
  %534 = vst.msk [vmem:[%s533] sm:$0x1] %vm532, %v531
  %s535 = scalar_lea.vmem %s0, 48
  %v536 = vld [vmem:[%s535] sm:$0x1]
  %537 = vrot.lane.b32.xlu0 %v536, 32
  %v538 = vpop.permute.xlu0 %537
  %vm539 = vcmask 769280
  %s540 = scalar_lea.vmem %s1, 23
  %541 = vst.msk [vmem:[%s540] sm:$0x1] %vm539, %v538
  %s542 = scalar_lea.vmem %s0, 17
  %v543 = vld [vmem:[%s542] sm:$0x1]
  %544 = vrot.lane.b32.xlu0 %v543, 30
  %v545 = vpop.permute.xlu0 %544
  %vm546 = vcmask 752880
  %s547 = scalar_lea.vmem %s1, 8
  %548 = vst.msk [vmem:[%s547] sm:$0x1] %vm546, %v545
  %s549 = scalar_lea.vmem %s0, 50
  %v550 = vld [vmem:[%s549] sm:$0x1]
  %551 = vrot.lane.b32.xlu0 %v550, 28
  %v552 = vpop.permute.xlu0 %551
  %vm553 = vcmask 736480
  %s554 = scalar_lea.vmem %s1, 24
  %555 = vst.msk [vmem:[%s554] sm:$0x1] %vm553, %v552
  %s556 = scalar_lea.vmem %s0, 19
  %v557 = vld [vmem:[%s556] sm:$0x1]
  %558 = vrot.lane.b32.xlu0 %v557, 26
  %v559 = vpop.permute.xlu0 %558
  %vm560 = vcmask 720080
  %s561 = scalar_lea.vmem %s1, 9
  %562 = vst.msk [vmem:[%s561] sm:$0x1] %vm560, %v559
  %s563 = scalar_lea.vmem %s0, 52
  %v564 = vld [vmem:[%s563] sm:$0x1]
  %565 = vrot.lane.b32.xlu0 %v564, 24
  %v566 = vpop.permute.xlu0 %565
  %vm567 = vcmask 703680
  %s568 = scalar_lea.vmem %s1, 25
  %569 = vst.msk [vmem:[%s568] sm:$0x1] %vm567, %v566
  %s570 = scalar_lea.vmem %s0, 21
  %v571 = vld [vmem:[%s570] sm:$0x1]
  %572 = vrot.lane.b32.xlu0 %v571, 22
  %v573 = vpop.permute.xlu0 %572
  %vm574 = vcmask 687280
  %s575 = scalar_lea.vmem %s1, 10
  %576 = vst.msk [vmem:[%s575] sm:$0x1] %vm574, %v573
  %s577 = scalar_lea.vmem %s0, 54
  %v578 = vld [vmem:[%s577] sm:$0x1]
  %579 = vrot.lane.b32.xlu0 %v578, 20
  %v580 = vpop.permute.xlu0 %579
  %vm581 = vcmask 670880
  %s582 = scalar_lea.vmem %s1, 26
  %583 = vst.msk [vmem:[%s582] sm:$0x1] %vm581, %v580
  %s584 = scalar_lea.vmem %s0, 23
  %v585 = vld [vmem:[%s584] sm:$0x1]
  %586 = vrot.lane.b32.xlu0 %v585, 18
  %v587 = vpop.permute.xlu0 %586
  %vm588 = vcmask 654480
  %s589 = scalar_lea.vmem %s1, 11
  %590 = vst.msk [vmem:[%s589] sm:$0x1] %vm588, %v587
  %s591 = scalar_lea.vmem %s0, 56
  %v592 = vld [vmem:[%s591] sm:$0x1]
  %593 = vrot.lane.b32.xlu0 %v592, 16
  %v594 = vpop.permute.xlu0 %593
  %vm595 = vcmask 638080
  %s596 = scalar_lea.vmem %s1, 27
  %597 = vst.msk [vmem:[%s596] sm:$0x1] %vm595, %v594
  %s598 = scalar_lea.vmem %s0, 25
  %v599 = vld [vmem:[%s598] sm:$0x1]
  %600 = vrot.lane.b32.xlu0 %v599, 14
  %v601 = vpop.permute.xlu0 %600
  %vm602 = vcmask 621680
  %s603 = scalar_lea.vmem %s1, 12
  %604 = vst.msk [vmem:[%s603] sm:$0x1] %vm602, %v601
  %s605 = scalar_lea.vmem %s0, 58
  %v606 = vld [vmem:[%s605] sm:$0x1]
  %607 = vrot.lane.b32.xlu0 %v606, 12
  %v608 = vpop.permute.xlu0 %607
  %vm609 = vcmask 605280
  %s610 = scalar_lea.vmem %s1, 28
  %611 = vst.msk [vmem:[%s610] sm:$0x1] %vm609, %v608
  %s612 = scalar_lea.vmem %s0, 27
  %v613 = vld [vmem:[%s612] sm:$0x1]
  %614 = vrot.lane.b32.xlu0 %v613, 10
  %v615 = vpop.permute.xlu0 %614
  %vm616 = vcmask 588880
  %s617 = scalar_lea.vmem %s1, 13
  %618 = vst.msk [vmem:[%s617] sm:$0x1] %vm616, %v615
  %s619 = scalar_lea.vmem %s0, 60
  %v620 = vld [vmem:[%s619] sm:$0x1]
  %621 = vrot.lane.b32.xlu0 %v620, 8
  %v622 = vpop.permute.xlu0 %621
  %vm623 = vcmask 572480
  %s624 = scalar_lea.vmem %s1, 29
  %625 = vst.msk [vmem:[%s624] sm:$0x1] %vm623, %v622
  %s626 = scalar_lea.vmem %s0, 29
  %v627 = vld [vmem:[%s626] sm:$0x1]
  %628 = vrot.lane.b32.xlu0 %v627, 6
  %v629 = vpop.permute.xlu0 %628
  %vm630 = vcmask 556080
  %s631 = scalar_lea.vmem %s1, 14
  %632 = vst.msk [vmem:[%s631] sm:$0x1] %vm630, %v629
  %s633 = scalar_lea.vmem %s0, 31
  %v634 = vld [vmem:[%s633] sm:$0x1]
  %635 = vrot.lane.b32.xlu0 %v634, 2
  %v636 = vpop.permute.xlu0 %635
  %vm637 = vcmask 523280
  %s638 = scalar_lea.vmem %s1, 15
  %639 = vst.msk [vmem:[%s638] sm:$0x1] %vm637, %v636

// kernel: model_forward.1
$region0: #{model_forward.1}
  #allocation0 [shape = 'u32[]', space=smem, size = 0x4, offset = 0x4, fixed_abs, tag = 'smem constant byte address 0x4 - core index']
  #allocation1 [shape = 'u32[144,128]{1,0:T(1,128)}', space=vmem, size = 0x12000, scoped, tag = 'internal scratch']
  %s0 = inlined_call_operand.vmem [shape: f32[32,128], index: 0, kind: input, shape index: {}]
  %s1 = inlined_call_operand.vmem [shape: f32[8], index: 1, kind: input, shape index: {}]
  %s2 = inlined_call_operand.vmem [shape: f32[8], index: 2, kind: input, shape index: {}]
  %s3 = inlined_call_operand.vmem [shape: f32[8,32,128], index: 3, kind: output, shape index: {}]
  %s4 = sld [smem:[#allocation0]]
  $region30: #{model_forward.1} parent=0
    _
  %s6 = ssub.s32 1, %s4
  %s7 = scalar_select 0, %s6, %s4
  $region1: #{model_forward.1} parent=0
    #allocation2 [shape = 'u8[512]{0}', space=smem, size = 0x200, scoped, tag = 'input window, operand 1, single buffered']
    #allocation3 [shape = 's32[1]{0}', space=sflag, size = 0x4, scoped, tag = 'scoped memory for model_forward.1']
    #allocation4 [shape = 'u8[512]{0}', space=smem, size = 0x200, scoped, tag = 'input window, operand 2, single buffered']
    #allocation5 [shape = 's32[1]{0}', space=sflag, size = 0x4, scoped, tag = 'scoped memory for model_forward.1']
    %8 = vsyncpa [#allocation3], 0
    %9 = vsyncpa [#allocation5], 0
    // Predicated region
    $region2: #{model_forward.1} parent=1 // pred_check
      _
    $region3: #{model_forward.1} parent=1 // pred_check_branch
      %11 = sbr.rel (0) target = $region5
    $region4: #{model_forward.1} parent=1 // pred_region
      _
    $region5: #{model_forward.1} parent=1 // pred_fallthru
      _
    // Predicated region
    $region6: #{model_forward.1} parent=1 // pred_check
      _
    $region7: #{model_forward.1} parent=1 // pred_check_branch
      %13 = sbr.rel (0) target = $region9
    $region8: #{model_forward.1} parent=1 // pred_region
      %s15 = ssub.s32 16, 16
      %16 = vsyncadd [#allocation3], %s15
      %s18 = sshll.u32 %s1, 4
      %s19 = int_to_ptr.vmem [resolvable:$true] %s18
      %21 = dma.vmem_to_smem %s19, 16, [#allocation2], [#allocation3]
    $region9: #{model_forward.1} parent=1 // pred_fallthru
      _
    // Predicated region
    $region10: #{model_forward.1} parent=1 // pred_check
      _
    $region11: #{model_forward.1} parent=1 // pred_check_branch
      %23 = sbr.rel (0) target = $region13
    $region12: #{model_forward.1} parent=1 // pred_region
      %s25 = ssub.s32 16, 16
      %26 = vsyncadd [#allocation5], %s25
      %s28 = sshll.u32 %s2, 4
      %s29 = int_to_ptr.vmem [resolvable:$true] %s28
      %31 = dma.vmem_to_smem %s29, 16, [#allocation4], [#allocation5]
    $region13: #{model_forward.1} parent=1 // pred_fallthru
      _
    // Predicated region
    $region14: #{model_forward.1} parent=1 // pred_check
      _
    $region15: #{model_forward.1} parent=1 // pred_check_branch
      %33 = sbr.rel (0) target = $region17
    $region16: #{model_forward.1} parent=1 // pred_region
      %34 = dma.done [#allocation3], 16
    $region17: #{model_forward.1} parent=1 // pred_fallthru
      _
    // Predicated region
    $region18: #{model_forward.1} parent=1 // pred_check
      _
    $region19: #{model_forward.1} parent=1 // pred_check_branch
      %36 = sbr.rel (0) target = $region21
    $region20: #{model_forward.1} parent=1 // pred_region
      %37 = dma.done [#allocation5], 16
    $region21: #{model_forward.1} parent=1 // pred_fallthru
      _
    %38 = sfence
    %v39 = vld [vmem:[%s0] sm:$0xff]
    %v40 = vld [vmem:[%s0 + $0x8] sm:$0xff]
    %v41 = vld [vmem:[%s0 + $0x10] sm:$0xff]
    %v42 = vld [vmem:[%s0 + $0x18] sm:$0xff]
    %s43 = sld [smem:[#allocation2]]
    %v44 = vstv %s43
    %v45 = vmul.f32 %v39, %v44
    %v46 = vmul.f32 %v40, %v44
    %v47 = vmul.f32 %v41, %v44
    %v48 = vmul.f32 %v42, %v44
    %s49 = sld [smem:[#allocation4]]
    %v50 = vstv %s49
    %v51 = vadd.f32 %v45, %v50
    %v52 = vadd.f32 %v46, %v50
    %v53 = vadd.f32 %v47, %v50
    %v54 = vadd.f32 %v48, %v50
    %v55 = vmul.f32 %v51, 0.5
    %v56 = vmul.f32 %v52, 0.5
    %v57 = vmul.f32 %v53, 0.5
    %v58 = vmul.f32 %v54, 0.5
    %v59 = vtanh.pop %v55
    %v60 = vtanh.pop %v56
    %v61 = vtanh.pop %v57
    %v62 = vtanh.pop %v58
    %v63 = vmul.f32 %v59, 0.5
    %v64 = vmul.f32 %v60, 0.5
    %v65 = vmul.f32 %v61, 0.5
    %v66 = vmul.f32 %v62, 0.5
    %v67 = vadd.f32 %v63, 0.5
    %v68 = vadd.f32 %v64, 0.5
    %v69 = vadd.f32 %v65, 0.5
    %v70 = vadd.f32 %v66, 0.5
    %v71 = vadd.f32 %v51, %v67
    %v72 = vadd.f32 %v52, %v68
    %v73 = vadd.f32 %v53, %v69
    %v74 = vadd.f32 %v54, %v70
    %75 = vst [vmem:[%s3] sm:$0xff] %v71
    %76 = vst [vmem:[%s3 + $0x8] sm:$0xff] %v72
    %77 = vst [vmem:[%s3 + $0x10] sm:$0xff] %v73
    %78 = vst [vmem:[%s3 + $0x18] sm:$0xff] %v74
    %s79 = sld [smem:[#allocation2 + $0x1]]
    %v80 = vstv %s79
    %v81 = vmul.f32 %v39, %v80
    %v82 = vmul.f32 %v40, %v80
    %v83 = vmul.f32 %v41, %v80
    %v84 = vmul.f32 %v42, %v80
    %s85 = sld [smem:[#allocation4 + $0x1]]
    %v86 = vstv %s85
    %v87 = vadd.f32 %v81, %v86
    %v88 = vadd.f32 %v82, %v86
    %v89 = vadd.f32 %v83, %v86
    %v90 = vadd.f32 %v84, %v86
    %v91 = vmul.f32 %v87, 0.5
    %v92 = vmul.f32 %v88, 0.5
    %v93 = vmul.f32 %v89, 0.5
    %v94 = vmul.f32 %v90, 0.5
    %v95 = vtanh.pop %v91
    %v96 = vtanh.pop %v92
    %v97 = vtanh.pop %v93
    %v98 = vtanh.pop %v94
    %v99 = vmul.f32 %v95, 0.5
    %v100 = vmul.f32 %v96, 0.5
    %v101 = vmul.f32 %v97, 0.5
    %v102 = vmul.f32 %v98, 0.5
    %v103 = vadd.f32 %v99, 0.5
    %v104 = vadd.f32 %v100, 0.5
    %v105 = vadd.f32 %v101, 0.5
    %v106 = vadd.f32 %v102, 0.5
    %v107 = vadd.f32 %v87, %v103
    %v108 = vadd.f32 %v88, %v104
    %v109 = vadd.f32 %v89, %v105
    %v110 = vadd.f32 %v90, %v106
    %s111 = scalar_lea.vmem %s3, 32
    %112 = vst [vmem:[%s111] sm:$0xff] %v107
    %113 = vst [vmem:[%s111 + $0x8] sm:$0xff] %v108
    %114 = vst [vmem:[%s111 + $0x10] sm:$0xff] %v109
    %115 = vst [vmem:[%s111 + $0x18] sm:$0xff] %v110
    %s116 = sld [smem:[#allocation2 + $0x2]]
    %v117 = vstv %s116
    %v118 = vmul.f32 %v39, %v117
    %v119 = vmul.f32 %v40, %v117
    %v120 = vmul.f32 %v41, %v117
    %v121 = vmul.f32 %v42, %v117
    %s122 = sld [smem:[#allocation4 + $0x2]]
    %v123 = vstv %s122
    %v124 = vadd.f32 %v118, %v123
    %v125 = vadd.f32 %v119, %v123
    %v126 = vadd.f32 %v120, %v123
    %v127 = vadd.f32 %v121, %v123
    %v128 = vmul.f32 %v124, 0.5
    %v129 = vmul.f32 %v125, 0.5
    %v130 = vmul.f32 %v126, 0.5
    %v131 = vmul.f32 %v127, 0.5
    %v132 = vtanh.pop %v128
    %v133 = vtanh.pop %v129
    %v134 = vtanh.pop %v130
    %v135 = vtanh.pop %v131
    %v136 = vmul.f32 %v132, 0.5
    %v137 = vmul.f32 %v133, 0.5
    %v138 = vmul.f32 %v134, 0.5
    %v139 = vmul.f32 %v135, 0.5
    %v140 = vadd.f32 %v136, 0.5
    %v141 = vadd.f32 %v137, 0.5
    %v142 = vadd.f32 %v138, 0.5
    %v143 = vadd.f32 %v139, 0.5
    %v144 = vadd.f32 %v124, %v140
    %v145 = vadd.f32 %v125, %v141
    %v146 = vadd.f32 %v126, %v142
    %v147 = vadd.f32 %v127, %v143
    %s148 = scalar_lea.vmem %s3, 64
    %149 = vst [vmem:[%s148] sm:$0xff] %v144
    %150 = vst [vmem:[%s148 + $0x8] sm:$0xff] %v145
    %151 = vst [vmem:[%s148 + $0x10] sm:$0xff] %v146
    %152 = vst [vmem:[%s148 + $0x18] sm:$0xff] %v147
    %s153 = sld [smem:[#allocation2 + $0x3]]
    %v154 = vstv %s153
    %v155 = vmul.f32 %v39, %v154
    %v156 = vmul.f32 %v40, %v154
    %v157 = vmul.f32 %v41, %v154
    %v158 = vmul.f32 %v42, %v154
    %s159 = sld [smem:[#allocation4 + $0x3]]
    %v160 = vstv %s159
    %v161 = vadd.f32 %v155, %v160
    %v162 = vadd.f32 %v156, %v160
    %v163 = vadd.f32 %v157, %v160
    %v164 = vadd.f32 %v158, %v160
    %v165 = vmul.f32 %v161, 0.5
    %v166 = vmul.f32 %v162, 0.5
    %v167 = vmul.f32 %v163, 0.5
    %v168 = vmul.f32 %v164, 0.5
    %v169 = vtanh.pop %v165
    %v170 = vtanh.pop %v166
    %v171 = vtanh.pop %v167
    %v172 = vtanh.pop %v168
    %v173 = vmul.f32 %v169, 0.5
    %v174 = vmul.f32 %v170, 0.5
    %v175 = vmul.f32 %v171, 0.5
    %v176 = vmul.f32 %v172, 0.5
    %v177 = vadd.f32 %v173, 0.5
    %v178 = vadd.f32 %v174, 0.5
    %v179 = vadd.f32 %v175, 0.5
    %v180 = vadd.f32 %v176, 0.5
    %v181 = vadd.f32 %v161, %v177
    %v182 = vadd.f32 %v162, %v178
    %v183 = vadd.f32 %v163, %v179
    %v184 = vadd.f32 %v164, %v180
    %s185 = scalar_lea.vmem %s3, 96
    %186 = vst [vmem:[%s185] sm:$0xff] %v181
    %187 = vst [vmem:[%s185 + $0x8] sm:$0xff] %v182
    %188 = vst [vmem:[%s185 + $0x10] sm:$0xff] %v183
    %189 = vst [vmem:[%s185 + $0x18] sm:$0xff] %v184
    %s190 = sld [smem:[#allocation2 + $0x4]]
    %v191 = vstv %s190
    %v192 = vmul.f32 %v39, %v191
    %v193 = vmul.f32 %v40, %v191
    %v194 = vmul.f32 %v41, %v191
    %v195 = vmul.f32 %v42, %v191
    %s196 = sld [smem:[#allocation4 + $0x4]]
    %v197 = vstv %s196
    %v198 = vadd.f32 %v192, %v197
    %v199 = vadd.f32 %v193, %v197
    %v200 = vadd.f32 %v194, %v197
    %v201 = vadd.f32 %v195, %v197
    %v202 = vmul.f32 %v198, 0.5
    %v203 = vmul.f32 %v199, 0.5
    %v204 = vmul.f32 %v200, 0.5
    %v205 = vmul.f32 %v201, 0.5
    %v206 = vtanh.pop %v202
    %v207 = vtanh.pop %v203
    %v208 = vtanh.pop %v204
    %v209 = vtanh.pop %v205
    %v210 = vmul.f32 %v206, 0.5
    %v211 = vmul.f32 %v207, 0.5
    %v212 = vmul.f32 %v208, 0.5
    %v213 = vmul.f32 %v209, 0.5
    %v214 = vadd.f32 %v210, 0.5
    %v215 = vadd.f32 %v211, 0.5
    %v216 = vadd.f32 %v212, 0.5
    %v217 = vadd.f32 %v213, 0.5
    %v218 = vadd.f32 %v198, %v214
    %v219 = vadd.f32 %v199, %v215
    %v220 = vadd.f32 %v200, %v216
    %v221 = vadd.f32 %v201, %v217
    %s222 = scalar_lea.vmem %s3, 128
    %223 = vst [vmem:[%s222] sm:$0xff] %v218
    %224 = vst [vmem:[%s222 + $0x8] sm:$0xff] %v219
    %225 = vst [vmem:[%s222 + $0x10] sm:$0xff] %v220
    %226 = vst [vmem:[%s222 + $0x18] sm:$0xff] %v221
    %s227 = sld [smem:[#allocation2 + $0x5]]
    %v228 = vstv %s227
    %v229 = vmul.f32 %v39, %v228
    %v230 = vmul.f32 %v40, %v228
    %v231 = vmul.f32 %v41, %v228
    %v232 = vmul.f32 %v42, %v228
    %s233 = sld [smem:[#allocation4 + $0x5]]
    %v234 = vstv %s233
    %v235 = vadd.f32 %v229, %v234
    %v236 = vadd.f32 %v230, %v234
    %v237 = vadd.f32 %v231, %v234
    %v238 = vadd.f32 %v232, %v234
    %v239 = vmul.f32 %v235, 0.5
    %v240 = vmul.f32 %v236, 0.5
    %v241 = vmul.f32 %v237, 0.5
    %v242 = vmul.f32 %v238, 0.5
    %v243 = vtanh.pop %v239
    %v244 = vtanh.pop %v240
    %v245 = vtanh.pop %v241
    %v246 = vtanh.pop %v242
    %v247 = vmul.f32 %v243, 0.5
    %v248 = vmul.f32 %v244, 0.5
    %v249 = vmul.f32 %v245, 0.5
    %v250 = vmul.f32 %v246, 0.5
    %v251 = vadd.f32 %v247, 0.5
    %v252 = vadd.f32 %v248, 0.5
    %v253 = vadd.f32 %v249, 0.5
    %v254 = vadd.f32 %v250, 0.5
    %v255 = vadd.f32 %v235, %v251
    %v256 = vadd.f32 %v236, %v252
    %v257 = vadd.f32 %v237, %v253
    %v258 = vadd.f32 %v238, %v254
    %s259 = scalar_lea.vmem %s3, 160
    %260 = vst [vmem:[%s259] sm:$0xff] %v255
    %261 = vst [vmem:[%s259 + $0x8] sm:$0xff] %v256
    %262 = vst [vmem:[%s259 + $0x10] sm:$0xff] %v257
    %263 = vst [vmem:[%s259 + $0x18] sm:$0xff] %v258
    %s264 = sld [smem:[#allocation2 + $0x6]]
    %v265 = vstv %s264
    %v266 = vmul.f32 %v39, %v265
    %v267 = vmul.f32 %v40, %v265
    %v268 = vmul.f32 %v41, %v265
    %v269 = vmul.f32 %v42, %v265
    %s270 = sld [smem:[#allocation4 + $0x6]]
    %v271 = vstv %s270
    %v272 = vadd.f32 %v266, %v271
    %v273 = vadd.f32 %v267, %v271
    %v274 = vadd.f32 %v268, %v271
    %v275 = vadd.f32 %v269, %v271
    %v276 = vmul.f32 %v272, 0.5
    %v277 = vmul.f32 %v273, 0.5
    %v278 = vmul.f32 %v274, 0.5
    %v279 = vmul.f32 %v275, 0.5
    %v280 = vtanh.pop %v276
    %v281 = vtanh.pop %v277
    %v282 = vtanh.pop %v278
    %v283 = vtanh.pop %v279
    %v284 = vmul.f32 %v280, 0.5
    %v285 = vmul.f32 %v281, 0.5
    %v286 = vmul.f32 %v282, 0.5
    %v287 = vmul.f32 %v283, 0.5
    %v288 = vadd.f32 %v284, 0.5
    %v289 = vadd.f32 %v285, 0.5
    %v290 = vadd.f32 %v286, 0.5
    %v291 = vadd.f32 %v287, 0.5
    %v292 = vadd.f32 %v272, %v288
    %v293 = vadd.f32 %v273, %v289
    %v294 = vadd.f32 %v274, %v290
    %v295 = vadd.f32 %v275, %v291
    %s296 = scalar_lea.vmem %s3, 192
    %297 = vst [vmem:[%s296] sm:$0xff] %v292
    %298 = vst [vmem:[%s296 + $0x8] sm:$0xff] %v293
    %299 = vst [vmem:[%s296 + $0x10] sm:$0xff] %v294
    %300 = vst [vmem:[%s296 + $0x18] sm:$0xff] %v295
    %s301 = sld [smem:[#allocation2 + $0x7]]
    %v302 = vstv %s301
    %v303 = vmul.f32 %v39, %v302
    %v304 = vmul.f32 %v40, %v302
    %v305 = vmul.f32 %v41, %v302
    %v306 = vmul.f32 %v42, %v302
    %s307 = sld [smem:[#allocation4 + $0x7]]
    %v308 = vstv %s307
    %v309 = vadd.f32 %v303, %v308
    %v310 = vadd.f32 %v304, %v308
    %v311 = vadd.f32 %v305, %v308
    %v312 = vadd.f32 %v306, %v308
    %v313 = vmul.f32 %v309, 0.5
    %v314 = vmul.f32 %v310, 0.5
    %v315 = vmul.f32 %v311, 0.5
    %v316 = vmul.f32 %v312, 0.5
    %v317 = vtanh.pop %v313
    %v318 = vtanh.pop %v314
    %v319 = vtanh.pop %v315
    %v320 = vtanh.pop %v316
    %v321 = vmul.f32 %v317, 0.5
    %v322 = vmul.f32 %v318, 0.5
    %v323 = vmul.f32 %v319, 0.5
    %v324 = vmul.f32 %v320, 0.5
    %v325 = vadd.f32 %v321, 0.5
    %v326 = vadd.f32 %v322, 0.5
    %v327 = vadd.f32 %v323, 0.5
    %v328 = vadd.f32 %v324, 0.5
    %v329 = vadd.f32 %v309, %v325
    %v330 = vadd.f32 %v310, %v326
    %v331 = vadd.f32 %v311, %v327
    %v332 = vadd.f32 %v312, %v328
    %s333 = scalar_lea.vmem %s3, 224
    %334 = vst [vmem:[%s333] sm:$0xff] %v329
    %335 = vst [vmem:[%s333 + $0x8] sm:$0xff] %v330
    %336 = vst [vmem:[%s333 + $0x10] sm:$0xff] %v331
    %337 = vst [vmem:[%s333 + $0x18] sm:$0xff] %v332
    // Predicated region
    $region22: #{model_forward.1} parent=1 // pred_check
      _
    $region23: #{model_forward.1} parent=1 // pred_check_branch
      %339 = sbr.rel (0) target = $region25
    $region24: #{model_forward.1} parent=1 // pred_region
      _
    $region25: #{model_forward.1} parent=1 // pred_fallthru
      _
    // Predicated region
    $region26: #{model_forward.1} parent=1 // pred_check
      _
    $region27: #{model_forward.1} parent=1 // pred_check_branch
      %341 = sbr.rel (0) target = $region29
    $region28: #{model_forward.1} parent=1 // pred_region
      _
    $region29: #{model_forward.1} parent=1 // pred_fallthru
      _
    %342 = vsyncpa [#allocation3], 1
    %343 = vsyncpa [#allocation5], 1

</llo_original>
